<compile_context>
chip_gen: v5e
topology: v5e:2x2
jax: 0.10.0
libtpu: 0.0.40
codegen_flags: <defaults>
</compile_context>

<pallas_src>
import numpy as np
import jax
import jax.numpy as jnp
from jax.experimental import pallas as pl
from jax.experimental.pallas import tpu as pltpu


# ---------------------------------------------------------------------------
# Static constants — mirror InverseDCT / ConvertYccToRGB buffer construction.
# ---------------------------------------------------------------------------
def _build_idct_matrix():
    """M[p, c] with p = x*8+y (pixel in block), c = u*8+v (DCT coeff index):
       M[p, c] = scale[u, v] * cos(pi*(2x+1)*u/16) * cos(pi*(2y+1)*v/16)."""
    xs = np.arange(8, dtype=np.float64)
    us = np.arange(8, dtype=np.float64)
    cosx = np.cos(np.pi * (2.0 * xs[:, None] + 1.0) * us[None, :] / 16.0)  # (x, u)
    basis = cosx[:, None, :, None] * cosx[None, :, None, :]                # (x, y, u, v)
    c = np.ones(8, dtype=np.float64)
    c[0] = np.sqrt(0.5)
    scale = 0.25 * np.outer(c, c)                                          # (u, v)
    M4 = scale[None, None, :, :] * basis                                   # (x, y, u, v)
    return M4.reshape(64, 64).astype(np.float32)                           # (p, c)


def _build_rgb_affine():
    """YCC->RGB with the single-channel broadcast folded: rgb[r] = slope[r]*y + bias[r]."""
    matrix = np.array([[1.0, 0.0, 1.402],
                       [1.0, -0.34414, -0.71414],
                       [1.0, 1.772, 0.0]], dtype=np.float64)
    offset = np.array([0.0, -128.0 / 255.0, -128.0 / 255.0], dtype=np.float64)
    slope = matrix.sum(axis=1)          # (3,)
    bias = matrix @ offset              # (3,)
    return slope.astype(np.float32), bias.astype(np.float32)


_M = _build_idct_matrix()               # (64 pixels, 64 coeffs)
_M_T = np.ascontiguousarray(_M.T)       # (64 coeffs, 64 pixels)
_RGB_SLOPE, _RGB_BIAS = _build_rgb_affine()

_TN_MAX = 4096                          # max rows (spatial tokens) per grid step


def _round_up(a, b):
    return ((a + b - 1) // b) * b


def _build_fused_constants(std, mean):
    """Fold std/mean, IDCT, (+128)/255 and the RGB affine into one matmul.

    Returns m_fused (64 coeffs, 192) and b_fused (1, 192), where output column
    index = r*64 + x*8 + y.
    """
    mt = jnp.asarray(_M_T)                                  # (64 coeff, 64 pix)
    slope = jnp.asarray(_RGB_SLOPE)                         # (3,)
    bias = jnp.asarray(_RGB_BIAS)                           # (3,)
    # m_fused[c, (r, p)] = M[p, c] * std[c] * slope[r] / 255
    m_fused = (mt[:, None, :] * std[:, None, None]
               * (slope[None, :, None] * (1.0 / 255.0))).reshape(64, 192)
    pix_mean = mean @ mt                                    # (64,) = (M @ mean)[p]
    b_fused = ((slope[:, None] * (1.0 / 255.0)) * pix_mean[None, :]
               + (slope[:, None] * (128.0 / 255.0) + bias[:, None]))   # (3, 64)
    return m_fused, b_fused.reshape(1, 192)


# ---------------------------------------------------------------------------
# Pallas kernel: one MXU matmul + bias per tile of spatial tokens.
# ---------------------------------------------------------------------------
def _dct_to_rgb_kernel(x_ref, m_ref, b_ref, o_ref):
    # x_ref: (TN, 64)  DCT coefficients      m_ref: (64, 192) fused matrix
    # b_ref: (1, 192)  fused bias            o_ref: (TN, 192) [R|G|B] pixels
    o_ref[...] = jnp.dot(x_ref[...], m_ref[...],
                         preferred_element_type=jnp.float32) + b_ref[...]


def convert_dct_to_rgb(x, chroma, luma_mean, luma_std, chroma_mean, chroma_std):
    """x: (B, 64, H, W) float32 NCHW DCT coefficients -> (B, 3, 8H, 8W) RGB."""
    B, C, H, W = x.shape
    assert C == 64
    std = chroma_std if chroma else luma_std
    mean = chroma_mean if chroma else luma_mean
    m_fused, b_fused = _build_fused_constants(std.astype(jnp.float32),
                                              mean.astype(jnp.float32))

    # --- glue: NCHW -> (N, 64) token layout ---
    N = B * H * W
    tn = min(_TN_MAX, _round_up(N, 256))
    n_pad = (-N) % tn
    xt = jnp.transpose(x, (0, 2, 3, 1)).reshape(N, 64)
    if n_pad:
        xt = jnp.pad(xt, ((0, n_pad), (0, 0)))
    npad = N + n_pad

    cost = pl.CostEstimate(
        flops=2 * npad * 64 * 192,
        transcendentals=0,
        bytes_accessed=(npad * 64 + npad * 192 + 64 * 192 + 192) * 4,
    )

    out_flat = pl.pallas_call(
        _dct_to_rgb_kernel,
        out_shape=jax.ShapeDtypeStruct((npad, 192), jnp.float32),
        grid=(npad // tn,),
        in_specs=[
            pl.BlockSpec((tn, 64), lambda i: (i, 0)),
            pl.BlockSpec((64, 192), lambda i: (0, 0)),
            pl.BlockSpec((1, 192), lambda i: (0, 0)),
        ],
        out_specs=pl.BlockSpec((tn, 192), lambda i: (i, 0)),
        compiler_params=pltpu.CompilerParams(
            dimension_semantics=("parallel",),
            vmem_limit_bytes=32 * 1024 * 1024,
        ),
        cost_estimate=cost,
    )(xt, m_fused, b_fused)

    # --- glue: block pixel unshuffle back to image layout ---
    out = out_flat[:N].reshape(B, H, W, 3, 8, 8)            # (b, h, w, r, x, y)
    out = jnp.transpose(out, (0, 3, 1, 4, 2, 5))            # (b, r, h, x, w, y)
    return out.reshape(B, 3, 8 * H, 8 * W)


# ---------------------------------------------------------------------------
# Pure-JAX reference (mirrors the PyTorch forward) for a sanity check.
# ---------------------------------------------------------------------------
def _reference(x, chroma, luma_mean, luma_std, chroma_mean, chroma_std):
    B, C, H, W = x.shape
    std = chroma_std if chroma else luma_std
    mean = chroma_mean if chroma else luma_mean
    out = x * std[None, :, None, None] + mean[None, :, None, None]
    pix = jnp.einsum('pc,bchw->bphw', jnp.asarray(_M), out)          # (B, 64, H, W)
    y = (pix + 128.0) / 255.0
    img = y.reshape(B, 8, 8, H, W)                                    # (b, x, y, h, w)
    img = jnp.transpose(img, (0, 3, 1, 4, 2)).reshape(B, 1, 8 * H, 8 * W)
    slope = jnp.asarray(_RGB_SLOPE)[None, :, None, None]
    bias = jnp.asarray(_RGB_BIAS)[None, :, None, None]
    return slope * img + bias


if __name__ == "__main__":
    B, H, W = 2, 8, 8
    key = jax.random.PRNGKey(0)
    k1, k2, k3, k4, k5 = jax.random.split(key, 5)

    x = jax.random.normal(k1, (B, 64, H, W), dtype=jnp.float32)
    luma_mean = 0.1 * jax.random.normal(k2, (64,), dtype=jnp.float32)
    luma_std = jax.random.uniform(k3, (64,), minval=0.5, maxval=1.5, dtype=jnp.float32)
    chroma_mean = 0.1 * jax.random.normal(k4, (64,), dtype=jnp.float32)
    chroma_std = jax.random.uniform(k5, (64,), minval=0.5, maxval=1.5, dtype=jnp.float32)

    ok = True
    for chroma in (False, True):
        out = convert_dct_to_rgb(x, chroma, luma_mean, luma_std, chroma_mean, chroma_std)
        out = jax.block_until_ready(out)
        ref = jax.block_until_ready(
            _reference(x, chroma, luma_mean, luma_std, chroma_mean, chroma_std))
        assert out.shape == (B, 3, 8 * H, 8 * W)
        ok = ok and bool(jnp.allclose(out, ref, atol=5e-3, rtol=5e-3))

    if ok:
        print("KERNEL_OK")
    else:
        print("MISMATCH")
</pallas_src>

<mosaic_0001>
module attributes {stable_mosaic.version = 11 : i64} {
  func.func @_dct_to_rgb_kernel(%arg0: i32, %arg1: memref<256x64xf32, #tpu.memory_space<vmem>>, %arg2: memref<64x192xf32, #tpu.memory_space<vmem>>, %arg3: memref<1x192xf32, #tpu.memory_space<vmem>>, %arg4: memref<256x192xf32, #tpu.memory_space<vmem>>) attributes {dimension_semantics = [#tpu.dimension_semantics<parallel>], iteration_bounds = array<i64: 1>, scalar_prefetch = 0 : i64, scratch_operands = 0 : i64, tpu.core_type = #tpu.core_type<tc>, window_params = [{transform_indices = @transform_0, window_bounds = array<i64: 256, 64>}, {pipeline_mode = #tpu.pipeline_mode<synchronous>, transform_indices = @transform_1, window_bounds = array<i64: 64, 192>}, {pipeline_mode = #tpu.pipeline_mode<synchronous>, transform_indices = @transform_2, window_bounds = array<i64: 1, 192>}, {transform_indices = @transform_3, window_bounds = array<i64: 256, 192>}]} {
    %c0 = arith.constant 0 : index
    %c0_0 = arith.constant 0 : index
    %0 = vector.load %arg1[%c0, %c0_0] : memref<256x64xf32, #tpu.memory_space<vmem>>, vector<256x64xf32>
    %c0_1 = arith.constant 0 : index
    %c0_2 = arith.constant 0 : index
    %1 = vector.load %arg2[%c0_1, %c0_2] : memref<64x192xf32, #tpu.memory_space<vmem>>, vector<64x192xf32>
    %cst = arith.constant dense<0.000000e+00> : vector<256x192xf32>
    %2 = tpu.matmul %0, %1, %cst {dimension_numbers = #tpu.dot_dimension_numbers<[1], [0], [0], [1], [0, 0, 1, 1], [], []>} : vector<256x64xf32>, vector<64x192xf32>, vector<256x192xf32> -> vector<256x192xf32>
    %c0_3 = arith.constant 0 : index
    %c0_4 = arith.constant 0 : index
    %3 = vector.load %arg3[%c0_3, %c0_4] : memref<1x192xf32, #tpu.memory_space<vmem>>, vector<1x192xf32>
    %4 = vector.broadcast %3 : vector<1x192xf32> to vector<256x192xf32>
    %5 = arith.addf %2, %4 : vector<256x192xf32>
    %c0_5 = arith.constant 0 : index
    %c0_6 = arith.constant 0 : index
    %6 = vector.load %arg4[%c0_5, %c0_6] : memref<256x192xf32, #tpu.memory_space<vmem>>, vector<256x192xf32>
    tpu.vector_store %arg4[%c0_5, %c0_6], %5 {strides = array<i32>} : memref<256x192xf32, #tpu.memory_space<vmem>>, vector<256x192xf32>,
    return
  }
  func.func @transform_0(%arg0: i32) -> (i32, i32) {
    %c0_i32 = arith.constant 0 : i32
    %c0_i32_0 = arith.constant 0 : i32
    return %arg0, %c0_i32 : i32, i32
  }
  func.func @transform_1(%arg0: i32) -> (i32, i32) {
    %c0_i32 = arith.constant 0 : i32
    %c0_i32_0 = arith.constant 0 : i32
    %c0_i32_1 = arith.constant 0 : i32
    return %c0_i32, %c0_i32_0 : i32, i32
  }
  func.func @transform_2(%arg0: i32) -> (i32, i32) {
    %c0_i32 = arith.constant 0 : i32
    %c0_i32_0 = arith.constant 0 : i32
    %c0_i32_1 = arith.constant 0 : i32
    return %c0_i32, %c0_i32_0 : i32, i32
  }
  func.func @transform_3(%arg0: i32) -> (i32, i32) {
    %c0_i32 = arith.constant 0 : i32
    %c0_i32_0 = arith.constant 0 : i32
    return %arg0, %c0_i32 : i32, i32
  }
}

</mosaic_0001>

<llo_original>
// kernel: tpu_custom_call.1
$region0: #{tpu_custom_call.1}
  #allocation0 [shape = 'u32[]', space=smem, size = 0x4, offset = 0x4, fixed_abs, tag = 'smem constant byte address 0x4 - core index']
  #allocation1 [shape = 'u32[72,128]{1,0:T(1,128)}', space=vmem, size = 0x9000, scoped, tag = 'internal scratch']
  %s0 = inlined_call_operand.vmem [shape: f32[256,64], index: 0, kind: input, shape index: {}]
  %s1 = inlined_call_operand.vmem [shape: f32[64,192], index: 1, kind: input, shape index: {}]
  %s2 = inlined_call_operand.vmem [shape: f32[1,192], index: 2, kind: input, shape index: {}]
  %s3 = inlined_call_operand.vmem [shape: f32[256,192], index: 3, kind: output, shape index: {}]
  %s4 = sld [smem:[#allocation0]]
  $region22: #{tpu_custom_call.1} parent=0
    _
  %s6 = ssub.s32 1, %s4
  %s7 = scalar_select 0, %s6, %s4
  // Predicated region
  $region2: #{tpu_custom_call.1} parent=0 // pred_check
    _
  $region3: #{tpu_custom_call.1} parent=0 // pred_check_branch
    %9 = sbr.rel (0) target = $region5
  $region4: #{tpu_custom_call.1} parent=0 // pred_region
    _
  $region5: #{tpu_custom_call.1} parent=0 // pred_fallthru
    _
  // Predicated region
  $region6: #{tpu_custom_call.1} parent=0 // pred_check
    _
  $region7: #{tpu_custom_call.1} parent=0 // pred_check_branch
    %11 = sbr.rel (0) target = $region9
  $region8: #{tpu_custom_call.1} parent=0 // pred_region
    _
  $region9: #{tpu_custom_call.1} parent=0 // pred_fallthru
    _
  // Predicated region
  $region10: #{tpu_custom_call.1} parent=0 // pred_check
    _
  $region11: #{tpu_custom_call.1} parent=0 // pred_check_branch
    %13 = sbr.rel (0) target = $region13
  $region12: #{tpu_custom_call.1} parent=0 // pred_region
    _
  $region13: #{tpu_custom_call.1} parent=0 // pred_fallthru
    _
  %v14 = vld [vmem:[%s0] sm:$0xff]
  %v15 = vld [vmem:[%s0 + $0x8] sm:$0xff]
  %v16 = vld [vmem:[%s0 + $0x10] sm:$0xff]
  %v17 = vld [vmem:[%s0 + $0x18] sm:$0xff]
  %v18 = vld [vmem:[%s0 + $0x20] sm:$0xff]
  %v19 = vld [vmem:[%s0 + $0x28] sm:$0xff]
  %v20 = vld [vmem:[%s0 + $0x30] sm:$0xff]
  %v21 = vld [vmem:[%s0 + $0x38] sm:$0xff]
  %v22 = vld [vmem:[%s0 + $0x40] sm:$0xff]
  %v23 = vld [vmem:[%s0 + $0x48] sm:$0xff]
  %v24 = vld [vmem:[%s0 + $0x50] sm:$0xff]
  %v25 = vld [vmem:[%s0 + $0x58] sm:$0xff]
  %v26 = vld [vmem:[%s0 + $0x60] sm:$0xff]
  %v27 = vld [vmem:[%s0 + $0x68] sm:$0xff]
  %v28 = vld [vmem:[%s0 + $0x70] sm:$0xff]
  %v29 = vld [vmem:[%s0 + $0x78] sm:$0xff]
  %v30 = vld [vmem:[%s0 + $0x80] sm:$0xff]
  %v31 = vld [vmem:[%s0 + $0x88] sm:$0xff]
  %v32 = vld [vmem:[%s0 + $0x90] sm:$0xff]
  %v33 = vld [vmem:[%s0 + $0x98] sm:$0xff]
  %v34 = vld [vmem:[%s0 + $0xa0] sm:$0xff]
  %v35 = vld [vmem:[%s0 + $0xa8] sm:$0xff]
  %v36 = vld [vmem:[%s0 + $0xb0] sm:$0xff]
  %v37 = vld [vmem:[%s0 + $0xb8] sm:$0xff]
  %v38 = vld [vmem:[%s0 + $0xc0] sm:$0xff]
  %v39 = vld [vmem:[%s0 + $0xc8] sm:$0xff]
  %v40 = vld [vmem:[%s0 + $0xd0] sm:$0xff]
  %v41 = vld [vmem:[%s0 + $0xd8] sm:$0xff]
  %v42 = vld [vmem:[%s0 + $0xe0] sm:$0xff]
  %v43 = vld [vmem:[%s0 + $0xe8] sm:$0xff]
  %v44 = vld [vmem:[%s0 + $0xf0] sm:$0xff]
  %v45 = vld [vmem:[%s0 + $0xf8] sm:$0xff]
  %v46 = vld [vmem:[%s1] sm:$0xff]
  %v47 = vld [vmem:[%s1 + $0x8] sm:$0xff]
  %v48 = vld [vmem:[%s1 + $0x10] sm:$0xff]
  %v49 = vld [vmem:[%s1 + $0x18] sm:$0xff]
  %v50 = vld [vmem:[%s1 + $0x20] sm:$0xff]
  %v51 = vld [vmem:[%s1 + $0x28] sm:$0xff]
  %v52 = vld [vmem:[%s1 + $0x30] sm:$0xff]
  %v53 = vld [vmem:[%s1 + $0x38] sm:$0xff]
  %v54 = vld [vmem:[%s1 + $0x40] sm:$0xff]
  %v55 = vld [vmem:[%s1 + $0x48] sm:$0xff]
  %v56 = vld [vmem:[%s1 + $0x50] sm:$0xff]
  %v57 = vld [vmem:[%s1 + $0x58] sm:$0xff]
  %v58 = vld [vmem:[%s1 + $0x60] sm:$0xff]
  %v59 = vld [vmem:[%s1 + $0x68] sm:$0xff]
  %v60 = vld [vmem:[%s1 + $0x70] sm:$0xff]
  %v61 = vld [vmem:[%s1 + $0x78] sm:$0xff]
  %v62 = vld [vmem:[%s2] sm:$0x3]
  %v64 = vperm.slane %v62, 0
  %v65 = vperm.slane %v62, 1
  %vm68 = vcmask 523264
  %v70 = vsel %vm68, %v14, 0
  %v73 = vsel %vm68, %v15, 0
  %v76 = vsel %vm68, %v16, 0
  %v79 = vsel %vm68, %v17, 0
  %v82 = vsel %vm68, %v18, 0
  %v85 = vsel %vm68, %v19, 0
  %v88 = vsel %vm68, %v20, 0
  %v91 = vsel %vm68, %v21, 0
  %v94 = vsel %vm68, %v22, 0
  %v97 = vsel %vm68, %v23, 0
  %v100 = vsel %vm68, %v24, 0
  %v103 = vsel %vm68, %v25, 0
  %v106 = vsel %vm68, %v26, 0
  %v109 = vsel %vm68, %v27, 0
  %v112 = vsel %vm68, %v28, 0
  %v115 = vsel %vm68, %v29, 0
  %v118 = vsel %vm68, %v30, 0
  %v121 = vsel %vm68, %v31, 0
  %v124 = vsel %vm68, %v32, 0
  %v127 = vsel %vm68, %v33, 0
  %v130 = vsel %vm68, %v34, 0
  %v133 = vsel %vm68, %v35, 0
  %v136 = vsel %vm68, %v36, 0
  %v139 = vsel %vm68, %v37, 0
  %v142 = vsel %vm68, %v38, 0
  %v145 = vsel %vm68, %v39, 0
  %v148 = vsel %vm68, %v40, 0
  %v151 = vsel %vm68, %v41, 0
  %v154 = vsel %vm68, %v42, 0
  %v157 = vsel %vm68, %v43, 0
  %v160 = vsel %vm68, %v44, 0
  %v163 = vsel %vm68, %v45, 0
  %165 = vmatpush.msra.mxu0 0.0
  %166 = vmatpush.msra.mxu0 0.0
  %167 = vmatpush.msra.mxu0 0.0
  %168 = vmatpush.msra.mxu0 0.0
  %169 = vmatpush.msra.mxu0 0.0
  %170 = vmatpush.msra.mxu0 0.0
  %171 = vmatpush.msra.mxu0 0.0
  %172 = vmatpush.msra.mxu0 0.0
  %173 = vmatpush.msra.mxu0 %v60
  %174 = vmatpush.msra.mxu0 %v58
  %175 = vmatpush.msra.mxu0 %v56
  %176 = vmatpush.msra.mxu0 %v54
  %177 = vmatpush.msra.mxu0 %v52
  %178 = vmatpush.msra.mxu0 %v50
  %179 = vmatpush.msra.mxu0 %v48
  %180 = vmatpush.msra.mxu0 %v46
  %181 = vmatmul.f32.gmra.mxu0 %v70
  %v182 = vpop.f32.mrf.mxu0
  %v183 = vadd.f32 %v64, %v182
  %184 = vmatmul.f32.gmra.mxu0 %v73
  %v185 = vpop.f32.mrf.mxu0
  %v186 = vadd.f32 %v64, %v185
  %187 = vmatmul.f32.gmra.mxu0 %v76
  %v188 = vpop.f32.mrf.mxu0
  %v189 = vadd.f32 %v64, %v188
  %190 = vmatmul.f32.gmra.mxu0 %v79
  %v191 = vpop.f32.mrf.mxu0
  %v192 = vadd.f32 %v64, %v191
  %193 = vmatmul.f32.gmra.mxu0 %v82
  %v194 = vpop.f32.mrf.mxu0
  %v195 = vadd.f32 %v64, %v194
  %196 = vmatmul.f32.gmra.mxu0 %v85
  %v197 = vpop.f32.mrf.mxu0
  %v198 = vadd.f32 %v64, %v197
  %199 = vmatmul.f32.gmra.mxu0 %v88
  %v200 = vpop.f32.mrf.mxu0
  %v201 = vadd.f32 %v64, %v200
  %202 = vmatmul.f32.gmra.mxu0 %v91
  %v203 = vpop.f32.mrf.mxu0
  %v204 = vadd.f32 %v64, %v203
  %205 = vmatmul.f32.gmra.mxu0 %v94
  %v206 = vpop.f32.mrf.mxu0
  %v207 = vadd.f32 %v64, %v206
  %208 = vmatmul.f32.gmra.mxu0 %v97
  %v209 = vpop.f32.mrf.mxu0
  %v210 = vadd.f32 %v64, %v209
  %211 = vmatmul.f32.gmra.mxu0 %v100
  %v212 = vpop.f32.mrf.mxu0
  %v213 = vadd.f32 %v64, %v212
  %214 = vmatmul.f32.gmra.mxu0 %v103
  %v215 = vpop.f32.mrf.mxu0
  %v216 = vadd.f32 %v64, %v215
  %217 = vmatmul.f32.gmra.mxu0 %v106
  %v218 = vpop.f32.mrf.mxu0
  %v219 = vadd.f32 %v64, %v218
  %220 = vmatmul.f32.gmra.mxu0 %v109
  %v221 = vpop.f32.mrf.mxu0
  %v222 = vadd.f32 %v64, %v221
  %223 = vmatmul.f32.gmra.mxu0 %v112
  %v224 = vpop.f32.mrf.mxu0
  %v225 = vadd.f32 %v64, %v224
  %226 = vmatmul.f32.gmra.mxu0 %v115
  %v227 = vpop.f32.mrf.mxu0
  %v228 = vadd.f32 %v64, %v227
  %229 = vmatmul.f32.gmra.mxu0 %v118
  %v230 = vpop.f32.mrf.mxu0
  %v231 = vadd.f32 %v64, %v230
  %232 = vmatmul.f32.gmra.mxu0 %v121
  %v233 = vpop.f32.mrf.mxu0
  %v234 = vadd.f32 %v64, %v233
  %235 = vmatmul.f32.gmra.mxu0 %v124
  %v236 = vpop.f32.mrf.mxu0
  %v237 = vadd.f32 %v64, %v236
  %238 = vmatmul.f32.gmra.mxu0 %v127
  %v239 = vpop.f32.mrf.mxu0
  %v240 = vadd.f32 %v64, %v239
  %241 = vmatmul.f32.gmra.mxu0 %v130
  %v242 = vpop.f32.mrf.mxu0
  %v243 = vadd.f32 %v64, %v242
  %244 = vmatmul.f32.gmra.mxu0 %v133
  %v245 = vpop.f32.mrf.mxu0
  %v246 = vadd.f32 %v64, %v245
  %247 = vmatmul.f32.gmra.mxu0 %v136
  %v248 = vpop.f32.mrf.mxu0
  %v249 = vadd.f32 %v64, %v248
  %250 = vmatmul.f32.gmra.mxu0 %v139
  %v251 = vpop.f32.mrf.mxu0
  %v252 = vadd.f32 %v64, %v251
  %253 = vmatmul.f32.gmra.mxu0 %v142
  %v254 = vpop.f32.mrf.mxu0
  %v255 = vadd.f32 %v64, %v254
  %256 = vmatmul.f32.gmra.mxu0 %v145
  %v257 = vpop.f32.mrf.mxu0
  %v258 = vadd.f32 %v64, %v257
  %259 = vmatmul.f32.gmra.mxu0 %v148
  %v260 = vpop.f32.mrf.mxu0
  %v261 = vadd.f32 %v64, %v260
  %262 = vmatmul.f32.gmra.mxu0 %v151
  %v263 = vpop.f32.mrf.mxu0
  %v264 = vadd.f32 %v64, %v263
  %265 = vmatmul.f32.gmra.mxu0 %v154
  %v266 = vpop.f32.mrf.mxu0
  %v267 = vadd.f32 %v64, %v266
  %268 = vmatmul.f32.gmra.mxu0 %v157
  %v269 = vpop.f32.mrf.mxu0
  %v270 = vadd.f32 %v64, %v269
  %271 = vmatmul.f32.gmra.mxu0 %v160
  %v272 = vpop.f32.mrf.mxu0
  %v273 = vadd.f32 %v64, %v272
  %274 = vmatmul.f32.gmra.mxu0 %v163
  %v275 = vpop.f32.mrf.mxu0
  %v276 = vadd.f32 %v64, %v275
  %277 = vdwg.mxu0
  %278 = vmatpush.msra.mxu0 0.0
  %279 = vmatpush.msra.mxu0 0.0
  %280 = vmatpush.msra.mxu0 0.0
  %281 = vmatpush.msra.mxu0 0.0
  %282 = vmatpush.msra.mxu0 0.0
  %283 = vmatpush.msra.mxu0 0.0
  %284 = vmatpush.msra.mxu0 0.0
  %285 = vmatpush.msra.mxu0 0.0
  %286 = vmatpush.msra.mxu0 %v61
  %287 = vmatpush.msra.mxu0 %v59
  %288 = vmatpush.msra.mxu0 %v57
  %289 = vmatpush.msra.mxu0 %v55
  %290 = vmatpush.msra.mxu0 %v53
  %291 = vmatpush.msra.mxu0 %v51
  %292 = vmatpush.msra.mxu0 %v49
  %293 = vmatpush.msra.mxu0 %v47
  %294 = vmatmul.f32.gmra.mxu0 %v70
  %v295 = vpop.f32.mrf.mxu0
  %v296 = vadd.f32 %v65, %v295
  %297 = vmatmul.f32.gmra.mxu0 %v73
  %v298 = vpop.f32.mrf.mxu0
  %v299 = vadd.f32 %v65, %v298
  %300 = vmatmul.f32.gmra.mxu0 %v76
  %v301 = vpop.f32.mrf.mxu0
  %v302 = vadd.f32 %v65, %v301
  %303 = vmatmul.f32.gmra.mxu0 %v79
  %v304 = vpop.f32.mrf.mxu0
  %v305 = vadd.f32 %v65, %v304
  %306 = vmatmul.f32.gmra.mxu0 %v82
  %v307 = vpop.f32.mrf.mxu0
  %v308 = vadd.f32 %v65, %v307
  %309 = vmatmul.f32.gmra.mxu0 %v85
  %v310 = vpop.f32.mrf.mxu0
  %v311 = vadd.f32 %v65, %v310
  %312 = vmatmul.f32.gmra.mxu0 %v88
  %v313 = vpop.f32.mrf.mxu0
  %v314 = vadd.f32 %v65, %v313
  %315 = vmatmul.f32.gmra.mxu0 %v91
  %v316 = vpop.f32.mrf.mxu0
  %v317 = vadd.f32 %v65, %v316
  %318 = vmatmul.f32.gmra.mxu0 %v94
  %v319 = vpop.f32.mrf.mxu0
  %v320 = vadd.f32 %v65, %v319
  %321 = vmatmul.f32.gmra.mxu0 %v97
  %v322 = vpop.f32.mrf.mxu0
  %v323 = vadd.f32 %v65, %v322
  %324 = vmatmul.f32.gmra.mxu0 %v100
  %v325 = vpop.f32.mrf.mxu0
  %v326 = vadd.f32 %v65, %v325
  %327 = vmatmul.f32.gmra.mxu0 %v103
  %v328 = vpop.f32.mrf.mxu0
  %v329 = vadd.f32 %v65, %v328
  %330 = vmatmul.f32.gmra.mxu0 %v106
  %v331 = vpop.f32.mrf.mxu0
  %v332 = vadd.f32 %v65, %v331
  %333 = vmatmul.f32.gmra.mxu0 %v109
  %v334 = vpop.f32.mrf.mxu0
  %v335 = vadd.f32 %v65, %v334
  %336 = vmatmul.f32.gmra.mxu0 %v112
  %v337 = vpop.f32.mrf.mxu0
  %v338 = vadd.f32 %v65, %v337
  %339 = vmatmul.f32.gmra.mxu0 %v115
  %v340 = vpop.f32.mrf.mxu0
  %v341 = vadd.f32 %v65, %v340
  %342 = vmatmul.f32.gmra.mxu0 %v118
  %v343 = vpop.f32.mrf.mxu0
  %v344 = vadd.f32 %v65, %v343
  %345 = vmatmul.f32.gmra.mxu0 %v121
  %v346 = vpop.f32.mrf.mxu0
  %v347 = vadd.f32 %v65, %v346
  %348 = vmatmul.f32.gmra.mxu0 %v124
  %v349 = vpop.f32.mrf.mxu0
  %v350 = vadd.f32 %v65, %v349
  %351 = vmatmul.f32.gmra.mxu0 %v127
  %v352 = vpop.f32.mrf.mxu0
  %v353 = vadd.f32 %v65, %v352
  %354 = vmatmul.f32.gmra.mxu0 %v130
  %v355 = vpop.f32.mrf.mxu0
  %v356 = vadd.f32 %v65, %v355
  %357 = vmatmul.f32.gmra.mxu0 %v133
  %v358 = vpop.f32.mrf.mxu0
  %v359 = vadd.f32 %v65, %v358
  %360 = vmatmul.f32.gmra.mxu0 %v136
  %v361 = vpop.f32.mrf.mxu0
  %v362 = vadd.f32 %v65, %v361
  %363 = vmatmul.f32.gmra.mxu0 %v139
  %v364 = vpop.f32.mrf.mxu0
  %v365 = vadd.f32 %v65, %v364
  %366 = vmatmul.f32.gmra.mxu0 %v142
  %v367 = vpop.f32.mrf.mxu0
  %v368 = vadd.f32 %v65, %v367
  %369 = vmatmul.f32.gmra.mxu0 %v145
  %v370 = vpop.f32.mrf.mxu0
  %v371 = vadd.f32 %v65, %v370
  %372 = vmatmul.f32.gmra.mxu0 %v148
  %v373 = vpop.f32.mrf.mxu0
  %v374 = vadd.f32 %v65, %v373
  %375 = vmatmul.f32.gmra.mxu0 %v151
  %v376 = vpop.f32.mrf.mxu0
  %v377 = vadd.f32 %v65, %v376
  %378 = vmatmul.f32.gmra.mxu0 %v154
  %v379 = vpop.f32.mrf.mxu0
  %v380 = vadd.f32 %v65, %v379
  %381 = vmatmul.f32.gmra.mxu0 %v157
  %v382 = vpop.f32.mrf.mxu0
  %v383 = vadd.f32 %v65, %v382
  %384 = vmatmul.f32.gmra.mxu0 %v160
  %v385 = vpop.f32.mrf.mxu0
  %v386 = vadd.f32 %v65, %v385
  %387 = vmatmul.f32.gmra.mxu0 %v163
  %v388 = vpop.f32.mrf.mxu0
  %v389 = vadd.f32 %v65, %v388
  %390 = vdwg.mxu0
  %391 = vst [vmem:[%s3] sm:$0xff] %v183
  %392 = vst.msk [vmem:[%s3 + $0x8] sm:$0xff] %vm68, %v296
  %393 = vst [vmem:[%s3 + $0x10] sm:$0xff] %v186
  %394 = vst.msk [vmem:[%s3 + $0x18] sm:$0xff] %vm68, %v299
  %395 = vst [vmem:[%s3 + $0x20] sm:$0xff] %v189
  %396 = vst.msk [vmem:[%s3 + $0x28] sm:$0xff] %vm68, %v302
  %397 = vst [vmem:[%s3 + $0x30] sm:$0xff] %v192
  %398 = vst.msk [vmem:[%s3 + $0x38] sm:$0xff] %vm68, %v305
  %399 = vst [vmem:[%s3 + $0x40] sm:$0xff] %v195
  %400 = vst.msk [vmem:[%s3 + $0x48] sm:$0xff] %vm68, %v308
  %401 = vst [vmem:[%s3 + $0x50] sm:$0xff] %v198
  %402 = vst.msk [vmem:[%s3 + $0x58] sm:$0xff] %vm68, %v311
  %403 = vst [vmem:[%s3 + $0x60] sm:$0xff] %v201
  %404 = vst.msk [vmem:[%s3 + $0x68] sm:$0xff] %vm68, %v314
  %405 = vst [vmem:[%s3 + $0x70] sm:$0xff] %v204
  %406 = vst.msk [vmem:[%s3 + $0x78] sm:$0xff] %vm68, %v317
  %407 = vst [vmem:[%s3 + $0x80] sm:$0xff] %v207
  %408 = vst.msk [vmem:[%s3 + $0x88] sm:$0xff] %vm68, %v320
  %409 = vst [vmem:[%s3 + $0x90] sm:$0xff] %v210
  %410 = vst.msk [vmem:[%s3 + $0x98] sm:$0xff] %vm68, %v323
  %411 = vst [vmem:[%s3 + $0xa0] sm:$0xff] %v213
  %412 = vst.msk [vmem:[%s3 + $0xa8] sm:$0xff] %vm68, %v326
  %413 = vst [vmem:[%s3 + $0xb0] sm:$0xff] %v216
  %414 = vst.msk [vmem:[%s3 + $0xb8] sm:$0xff] %vm68, %v329
  %415 = vst [vmem:[%s3 + $0xc0] sm:$0xff] %v219
  %416 = vst.msk [vmem:[%s3 + $0xc8] sm:$0xff] %vm68, %v332
  %417 = vst [vmem:[%s3 + $0xd0] sm:$0xff] %v222
  %418 = vst.msk [vmem:[%s3 + $0xd8] sm:$0xff] %vm68, %v335
  %419 = vst [vmem:[%s3 + $0xe0] sm:$0xff] %v225
  %420 = vst.msk [vmem:[%s3 + $0xe8] sm:$0xff] %vm68, %v338
  %421 = vst [vmem:[%s3 + $0xf0] sm:$0xff] %v228
  %422 = vst.msk [vmem:[%s3 + $0xf8] sm:$0xff] %vm68, %v341
  %423 = vst [vmem:[%s3 + $0x100] sm:$0xff] %v231
  %424 = vst.msk [vmem:[%s3 + $0x108] sm:$0xff] %vm68, %v344
  %425 = vst [vmem:[%s3 + $0x110] sm:$0xff] %v234
  %426 = vst.msk [vmem:[%s3 + $0x118] sm:$0xff] %vm68, %v347
  %427 = vst [vmem:[%s3 + $0x120] sm:$0xff] %v237
  %428 = vst.msk [vmem:[%s3 + $0x128] sm:$0xff] %vm68, %v350
  %429 = vst [vmem:[%s3 + $0x130] sm:$0xff] %v240
  %430 = vst.msk [vmem:[%s3 + $0x138] sm:$0xff] %vm68, %v353
  %431 = vst [vmem:[%s3 + $0x140] sm:$0xff] %v243
  %432 = vst.msk [vmem:[%s3 + $0x148] sm:$0xff] %vm68, %v356
  %433 = vst [vmem:[%s3 + $0x150] sm:$0xff] %v246
  %434 = vst.msk [vmem:[%s3 + $0x158] sm:$0xff] %vm68, %v359
  %435 = vst [vmem:[%s3 + $0x160] sm:$0xff] %v249
  %436 = vst.msk [vmem:[%s3 + $0x168] sm:$0xff] %vm68, %v362
  %437 = vst [vmem:[%s3 + $0x170] sm:$0xff] %v252
  %438 = vst.msk [vmem:[%s3 + $0x178] sm:$0xff] %vm68, %v365
  %439 = vst [vmem:[%s3 + $0x180] sm:$0xff] %v255
  %440 = vst.msk [vmem:[%s3 + $0x188] sm:$0xff] %vm68, %v368
  %441 = vst [vmem:[%s3 + $0x190] sm:$0xff] %v258
  %442 = vst.msk [vmem:[%s3 + $0x198] sm:$0xff] %vm68, %v371
  %443 = vst [vmem:[%s3 + $0x1a0] sm:$0xff] %v261
  %444 = vst.msk [vmem:[%s3 + $0x1a8] sm:$0xff] %vm68, %v374
  %445 = vst [vmem:[%s3 + $0x1b0] sm:$0xff] %v264
  %446 = vst.msk [vmem:[%s3 + $0x1b8] sm:$0xff] %vm68, %v377
  %447 = vst [vmem:[%s3 + $0x1c0] sm:$0xff] %v267
  %448 = vst.msk [vmem:[%s3 + $0x1c8] sm:$0xff] %vm68, %v380
  %449 = vst [vmem:[%s3 + $0x1d0] sm:$0xff] %v270
  %450 = vst.msk [vmem:[%s3 + $0x1d8] sm:$0xff] %vm68, %v383
  %451 = vst [vmem:[%s3 + $0x1e0] sm:$0xff] %v273
  %452 = vst.msk [vmem:[%s3 + $0x1e8] sm:$0xff] %vm68, %v386
  %453 = vst [vmem:[%s3 + $0x1f0] sm:$0xff] %v276
  %454 = vst.msk [vmem:[%s3 + $0x1f8] sm:$0xff] %vm68, %v389
  // Predicated region
  $region14: #{tpu_custom_call.1} parent=0 // pred_check
    _
  $region15: #{tpu_custom_call.1} parent=0 // pred_check_branch
    %456 = sbr.rel (0) target = $region17
  $region16: #{tpu_custom_call.1} parent=0 // pred_region
    _
  $region17: #{tpu_custom_call.1} parent=0 // pred_fallthru
    _
  // Predicated region
  $region18: #{tpu_custom_call.1} parent=0 // pred_check
    _
  $region19: #{tpu_custom_call.1} parent=0 // pred_check_branch
    %458 = sbr.rel (0) target = $region21
  $region20: #{tpu_custom_call.1} parent=0 // pred_region
    _
  $region21: #{tpu_custom_call.1} parent=0 // pred_fallthru
    _

</llo_original>
